<compile_context>
chip_gen: v7x
topology: tpu7x:2x2x1
jax: 0.10.0
libtpu: 0.0.40
codegen_flags: <defaults>
</compile_context>

<pallas_src>
import jax
import jax.numpy as jnp
from jax.experimental import pallas as pl
from jax.experimental.pallas import tpu as pltpu

LANES = 128
NCH = 30  # 2 boxes * 5 + 20 classes


def _round_up(x, m):
    return ((x + m - 1) // m) * m


def _device_caps():
    """(max block rows, scoped-VMEM ceiling in bytes) per TPU generation."""
    try:
        kind = jax.devices()[0].device_kind.lower()
    except Exception:
        kind = ""
    if ("v5" in kind) or ("v6" in kind) or ("trillium" in kind):
        return 512, 100 << 20        # 128 MiB physical VMEM: big blocks are fine
    # v7x has only 64 MiB/TC; unknown devices get the conservative setting too.
    return 256, 44 << 20


def _pick_r_blk(r_raw, cap, group):
    """Pick block rows so there are >= 4 grid steps (pipelining + v7x 2-TC split)."""
    target_steps = 4
    r_blk = _round_up(max(1, -(-r_raw // target_steps)), group)
    r_blk = max(group, min(r_blk, cap))
    g = -(-r_raw // r_blk)
    if g >= 4 and (g % 2 == 1):
        # best effort: keep the step count even so both v7x cores stay balanced
        alt = max(group, min(cap, _round_up(-(-r_raw // (g - 1)), group)))
        if (-(-r_raw // alt)) % 2 == 0:
            r_blk = alt
    return r_blk


def _make_kernel(S, l_coord, l_noobj, r_blk, group):
    inv_S = 1.0 / float(S)
    l_coord = float(l_coord)
    l_noobj = float(l_noobj)
    n_groups = r_blk // group

    def kernel(p_ref, t_ref, out_ref):
        # p_ref / t_ref: (30, r_blk, 128) channel slabs (f32 or bf16).
        # channels: [x0,y0,w0,h0,c0, x1,y1,w1,h1,c1, 20 class scores]

        def ld(ref, c, base):
            return ref[c, pl.ds(base, group), :].astype(jnp.float32)

        def group_loss(g, acc):
            base = pl.multiple_of(g * group, group)

            # --- masks from target confidence of box 0 ------------------
            t4 = ld(t_ref, 4, base)
            has_obj = jnp.where(t4 > 0.0, 1.0, 0.0)
            no_obj = 1.0 - has_obj

            # --- no-object confidence term ------------------------------
            p4 = ld(p_ref, 4, base)
            p9 = ld(p_ref, 9, base)
            t9 = ld(t_ref, 9, base)
            noo = (p4 - t4) ** 2 + (p9 - t9) ** 2

            # --- class prediction term, channels 10..29 ------------------
            d = ld(p_ref, 10, base) - ld(t_ref, 10, base)
            cls_sum = d * d
            for c in range(11, NCH):
                d = ld(p_ref, c, base) - ld(t_ref, c, base)
                cls_sum = cls_sum + d * d

            # --- target box corners (shared by both predicted boxes) -----
            tx = ld(t_ref, 0, base)
            ty = ld(t_ref, 1, base)
            tw = ld(t_ref, 2, base)
            th = ld(t_ref, 3, base)
            tcx = tx * inv_S
            tcy = ty * inv_S
            tx1 = tcx - 0.5 * tw
            tx2 = tcx + 0.5 * tw
            ty1 = tcy - 0.5 * th
            ty2 = tcy + 0.5 * th
            t_area = tw * th

            def iou(bx, by, bw, bh):
                cx = bx * inv_S
                cy = by * inv_S
                px1 = cx - 0.5 * bw
                px2 = cx + 0.5 * bw
                py1 = cy - 0.5 * bh
                py2 = cy + 0.5 * bh
                iw = jnp.maximum(jnp.minimum(px2, tx2) - jnp.maximum(px1, tx1), 0.0)
                ih = jnp.maximum(jnp.minimum(py2, ty2) - jnp.maximum(py1, ty1), 0.0)
                inter = iw * ih
                denom = bw * bh + t_area - inter
                # padded / degenerate zero-area cells: inter is 0 there too
                denom = jnp.where(denom != 0.0, denom, 1.0)
                r = pl.reciprocal(denom, approx=True)     # EUP slot
                r = r * (2.0 - denom * r)                 # one Newton step
                return inter * r

            p0 = ld(p_ref, 0, base)
            p1 = ld(p_ref, 1, base)
            p2 = ld(p_ref, 2, base)
            p3 = ld(p_ref, 3, base)
            p5 = ld(p_ref, 5, base)
            p6 = ld(p_ref, 6, base)
            p7 = ld(p_ref, 7, base)
            p8 = ld(p_ref, 8, base)

            iou0 = iou(p0, p1, p2, p3)
            iou1 = iou(p5, p6, p7, p8)
            pick1 = iou1 > iou0                     # responsible box = box 1?
            max_iou = jnp.maximum(iou0, iou1)

            def sel(a, b):
                return jnp.where(pick1, b, a)

            bx = sel(p0, p5)
            by = sel(p1, p6)
            bw = sel(p2, p7)
            bh = sel(p3, p8)
            bc = sel(p4, p9)

            def sqrt_diff(a, b):
                # clamp at 0: raw sqrt of a negative predicted w/h would be NaN;
                # identical to the reference semantics for non-negative preds.
                return jnp.sqrt(jnp.maximum(a, 0.0)) - jnp.sqrt(jnp.maximum(b, 0.0))

            # --- coordinate regression (responsible box only) -------------
            reg = ((bx - tx) ** 2 + (by - ty) ** 2 +
                   sqrt_diff(bw, tw) ** 2 + sqrt_diff(bh, th) ** 2)

            # --- containing-object confidence (target = IoU, detached) ----
            contain = (bc - max_iou) ** 2

            per_cell = (has_obj * (l_coord * reg + contain + cls_sum) +
                        l_noobj * (no_obj * noo))
            return acc + per_cell

        acc0 = jnp.zeros((group, LANES), jnp.float32)
        out_ref[...] = jax.lax.fori_loop(0, n_groups, group_loss, acc0)

    return kernel


def _run_slab_kernel(pred_s, targ_s, S, l_coord, l_noobj, r_blk, group, vmem_cap):
    """pred_s / targ_s: (30, r_total, 128) zero-padded channel slabs."""
    nch, r_total, lanes = pred_s.shape
    assert nch == NCH and lanes == LANES and r_total % r_blk == 0
    G = r_total // r_blk

    itemsize = jnp.dtype(pred_s.dtype).itemsize
    # 2 inputs x 2 pipeline buffers x one block, plus headroom for out + scratch
    in_bufs = 2 * 2 * NCH * r_blk * LANES * itemsize
    vmem_limit = int(min(vmem_cap, max(32 << 20, in_bufs + (8 << 20))))

    kernel = _make_kernel(S, l_coord, l_noobj, r_blk, group)
    partials = pl.pallas_call(
        kernel,
        out_shape=jax.ShapeDtypeStruct((G * group, LANES), jnp.float32),
        grid=(G,),
        in_specs=[
            pl.BlockSpec((NCH, r_blk, LANES), lambda i: (0, i, 0)),
            pl.BlockSpec((NCH, r_blk, LANES), lambda i: (0, i, 0)),
        ],
        out_specs=pl.BlockSpec((group, LANES), lambda i: (i, 0)),
        compiler_params=pltpu.CompilerParams(
            dimension_semantics=("parallel",),
            vmem_limit_bytes=vmem_limit),
    )(pred_s, targ_s)
    return jnp.sum(partials)


def _to_channel_slabs(x, cells, r_total):
    """(N,S,S,30) -> (30, r_total, 128) channel-major slabs (cells dense in lanes).

    Single fused XLA pad+transpose pass; padded tail cells are zero in both
    tensors so they contribute exactly 0 loss (no validity mask needed).
    TODO(synk): this is still one extra HBM round trip per input; producers
    that can emit this layout directly should call yolo_loss_pallas_from_slabs.
    """
    if x.dtype != jnp.bfloat16:
        x = x.astype(jnp.float32)
    x = x.reshape(cells, NCH)
    x = jnp.pad(x, ((0, r_total * LANES - cells), (0, 0)))
    return jnp.transpose(x.reshape(r_total, LANES, NCH), (2, 0, 1))


def yolo_loss_pallas(pred, target, S, B, l_coord, l_noobj):
    """pred/target: (N, S, S, B*5+20=30), channel-last, f32 or bf16."""
    assert B == 2, "kernel is specialized for B=2 boxes per cell"
    N = pred.shape[0]
    cells = N * S * S

    group = 16 if (pred.dtype == jnp.bfloat16 or target.dtype == jnp.bfloat16) else 8
    cap, vmem_cap = _device_caps()
    r_raw = -(-cells // LANES)                     # ceil(cells / 128)
    r_blk = _pick_r_blk(r_raw, cap, group)
    r_total = _round_up(r_raw, r_blk)

    pred_s = _to_channel_slabs(pred, cells, r_total)
    targ_s = _to_channel_slabs(target, cells, r_total)
    total = _run_slab_kernel(pred_s, targ_s, S, l_coord, l_noobj, r_blk, group, vmem_cap)
    # TODO(synk): forward-only; a training drop-in needs a custom_vjp that keeps
    # the detached-IoU semantics of the contain-confidence target.
    return total / float(N)


def yolo_loss_pallas_from_slabs(pred_slabs, target_slabs, batch_size, S, l_coord, l_noobj):
    """For producers that already emit the (30, R, 128) slab layout (zero-padded
    tail): skips the relayout pre-pass so the kernel runs at the HBM roofline."""
    group = 16 if (pred_slabs.dtype == jnp.bfloat16 or
                   target_slabs.dtype == jnp.bfloat16) else 8
    cap, vmem_cap = _device_caps()
    r_total = pred_slabs.shape[1]
    r_blk = _pick_r_blk(r_total, cap, group)
    pad = _round_up(r_total, r_blk) - r_total
    if pad:
        pred_slabs = jnp.pad(pred_slabs, ((0, 0), (0, pad), (0, 0)))
        target_slabs = jnp.pad(target_slabs, ((0, 0), (0, pad), (0, 0)))
    total = _run_slab_kernel(pred_slabs, target_slabs, S, l_coord, l_noobj,
                             r_blk, group, vmem_cap)
    return total / float(batch_size)


# ---------------- plain-JAX reference / tiny-problem fallback --------------
def yolo_loss_ref(pred, target, S, l_coord, l_noobj):
    N = pred.shape[0]
    p = pred.reshape(-1, NCH).astype(jnp.float32)
    t = target.reshape(-1, NCH).astype(jnp.float32)
    has = (t[:, 4] > 0).astype(jnp.float32)
    noo = 1.0 - has
    noo_loss = jnp.sum(noo * ((p[:, 4] - t[:, 4]) ** 2 + (p[:, 9] - t[:, 9]) ** 2))
    cls_loss = jnp.sum(has * jnp.sum((p[:, 10:] - t[:, 10:]) ** 2, axis=1))

    def iou(b, tb):
        bx1, by1 = b[:, 0] / S - 0.5 * b[:, 2], b[:, 1] / S - 0.5 * b[:, 3]
        bx2, by2 = b[:, 0] / S + 0.5 * b[:, 2], b[:, 1] / S + 0.5 * b[:, 3]
        tx1, ty1 = tb[:, 0] / S - 0.5 * tb[:, 2], tb[:, 1] / S - 0.5 * tb[:, 3]
        tx2, ty2 = tb[:, 0] / S + 0.5 * tb[:, 2], tb[:, 1] / S + 0.5 * tb[:, 3]
        iw = jnp.maximum(jnp.minimum(bx2, tx2) - jnp.maximum(bx1, tx1), 0.0)
        ih = jnp.maximum(jnp.minimum(by2, ty2) - jnp.maximum(by1, ty1), 0.0)
        inter = iw * ih
        a1 = (bx2 - bx1) * (by2 - by1)
        a2 = (tx2 - tx1) * (ty2 - ty1)
        denom = a1 + a2 - inter
        denom = jnp.where(denom != 0.0, denom, 1.0)
        return inter / denom

    iou0 = iou(p[:, 0:4], t[:, 0:4])
    iou1 = iou(p[:, 5:9], t[:, 0:4])
    pick1 = (iou1 > iou0).astype(jnp.float32)
    max_iou = jnp.maximum(iou0, iou1)
    box = p[:, 0:5] * (1.0 - pick1)[:, None] + p[:, 5:10] * pick1[:, None]

    def s(x):
        return jnp.sqrt(jnp.maximum(x, 0.0))

    reg = ((box[:, 0] - t[:, 0]) ** 2 + (box[:, 1] - t[:, 1]) ** 2 +
           (s(box[:, 2]) - s(t[:, 2])) ** 2 + (s(box[:, 3]) - s(t[:, 3])) ** 2)
    reg_loss = jnp.sum(has * reg)
    contain_loss = jnp.sum(has * (box[:, 4] - max_iou) ** 2)
    return (l_coord * reg_loss + contain_loss + l_noobj * noo_loss + cls_loss) / N


def yolo_loss(pred, target, S, B, l_coord, l_noobj, *, min_cells_for_pallas=4096):
    """Dispatcher: tiny problems take the fused-XLA path (relayout + kernel launch
    would dominate); everything else goes through the Pallas kernel."""
    cells = pred.shape[0] * S * S
    if cells < min_cells_for_pallas:
        return yolo_loss_ref(pred, target, S, l_coord, l_noobj)
    return yolo_loss_pallas(pred, target, S, B, l_coord, l_noobj)


if __name__ == "__main__":
    S, B, l_coord, l_noobj = 7, 2, 5.0, 0.5
    N = 2
    key = jax.random.PRNGKey(0)
    k1, k2, k3 = jax.random.split(key, 3)

    # pred: raw network output (x,y,w,h,c for 2 boxes + 20 class scores)
    pred = jax.random.uniform(k1, (N, S, S, NCH), jnp.float32, 0.05, 0.95)
    # target: same layout; confidences are 0/1 object-presence indicators
    target = jax.random.uniform(k2, (N, S, S, NCH), jnp.float32, 0.05, 0.95)
    obj = (jax.random.uniform(k3, (N, S, S)) > 0.5).astype(jnp.float32)
    target = target.at[..., 4].set(obj)
    target = target.at[..., 9].set(obj)

    # run the Pallas kernel explicitly (the auto-dispatcher would use the XLA
    # fallback at this tiny size)
    loss = yolo_loss_pallas(pred, target, S, B, l_coord, l_noobj)
    jax.block_until_ready(loss)

    ref = yolo_loss_ref(pred, target, S, l_coord, l_noobj)
    assert jnp.allclose(loss, ref, rtol=1e-4, atol=1e-4), (float(loss), float(ref))

    # dispatcher path (tiny problem -> fused XLA fallback) agrees too
    loss2 = yolo_loss(pred, target, S, B, l_coord, l_noobj)
    jax.block_until_ready(loss2)
    assert jnp.allclose(loss2, ref, rtol=1e-5, atol=1e-5), (float(loss2), float(ref))

    print("KERNEL_OK")
</pallas_src>

<mosaic_0001>
module attributes {stable_mosaic.version = 11 : i64} {
  func.func @kernel(%arg0: i32, %arg1: memref<30x8x128xf32, #tpu.memory_space<vmem>>, %arg2: memref<30x8x128xf32, #tpu.memory_space<vmem>>, %arg3: memref<8x128xf32, #tpu.memory_space<vmem>>) attributes {dimension_semantics = [#tpu.dimension_semantics<parallel>], iteration_bounds = array<i64: 1>, scalar_prefetch = 0 : i64, scratch_operands = 0 : i64, tpu.core_type = #tpu.core_type<tc>, window_params = [{transform_indices = @transform_0, window_bounds = array<i64: 30, 8, 128>}, {transform_indices = @transform_1, window_bounds = array<i64: 30, 8, 128>}, {transform_indices = @transform_2, window_bounds = array<i64: 8, 128>}]} {
    %cst = arith.constant 0.000000e+00 : f32
    %0 = vector.broadcast %cst : f32 to vector<8x128xf32>
    %c0_i32 = arith.constant 0 : i32
    %c8_i32 = arith.constant 8 : i32
    %1 = arith.muli %c0_i32, %c8_i32 : i32
    %2 = tpu.assume_multiple %1, 8 : i32
    %c4 = arith.constant 4 : index
    %3 = arith.index_cast %2 : i32 to index
    %c0 = arith.constant 0 : index
    %4 = vector.load %arg2[%c4, %3, %c0] : memref<30x8x128xf32, #tpu.memory_space<vmem>>, vector<1x8x128xf32>
    %5 = vector.shape_cast %4 : vector<1x8x128xf32> to vector<8x128xf32>
    %cst_0 = arith.constant 0.000000e+00 : f32
    %6 = vector.broadcast %cst_0 : f32 to vector<8x128xf32>
    %7 = arith.cmpf ogt, %5, %6 : vector<8x128xf32>
    %cst_1 = arith.constant 1.000000e+00 : f32
    %cst_2 = arith.constant 0.000000e+00 : f32
    %8 = vector.broadcast %cst_1 : f32 to vector<8x128xf32>
    %9 = vector.broadcast %cst_2 : f32 to vector<8x128xf32>
    %10 = arith.select %7, %8, %9 : vector<8x128xi1>, vector<8x128xf32>
    %cst_3 = arith.constant 1.000000e+00 : f32
    %11 = vector.broadcast %cst_3 : f32 to vector<8x128xf32>
    %12 = arith.subf %11, %10 : vector<8x128xf32>
    %c4_4 = arith.constant 4 : index
    %13 = arith.index_cast %2 : i32 to index
    %c0_5 = arith.constant 0 : index
    %14 = vector.load %arg1[%c4_4, %13, %c0_5] : memref<30x8x128xf32, #tpu.memory_space<vmem>>, vector<1x8x128xf32>
    %15 = vector.shape_cast %14 : vector<1x8x128xf32> to vector<8x128xf32>
    %c9 = arith.constant 9 : index
    %16 = arith.index_cast %2 : i32 to index
    %c0_6 = arith.constant 0 : index
    %17 = vector.load %arg1[%c9, %16, %c0_6] : memref<30x8x128xf32, #tpu.memory_space<vmem>>, vector<1x8x128xf32>
    %18 = vector.shape_cast %17 : vector<1x8x128xf32> to vector<8x128xf32>
    %c9_7 = arith.constant 9 : index
    %19 = arith.index_cast %2 : i32 to index
    %c0_8 = arith.constant 0 : index
    %20 = vector.load %arg2[%c9_7, %19, %c0_8] : memref<30x8x128xf32, #tpu.memory_space<vmem>>, vector<1x8x128xf32>
    %21 = vector.shape_cast %20 : vector<1x8x128xf32> to vector<8x128xf32>
    %22 = arith.subf %15, %5 : vector<8x128xf32>
    %23 = arith.mulf %22, %22 : vector<8x128xf32>
    %24 = arith.subf %18, %21 : vector<8x128xf32>
    %25 = arith.mulf %24, %24 : vector<8x128xf32>
    %26 = arith.addf %23, %25 : vector<8x128xf32>
    %c10 = arith.constant 10 : index
    %27 = arith.index_cast %2 : i32 to index
    %c0_9 = arith.constant 0 : index
    %28 = vector.load %arg1[%c10, %27, %c0_9] : memref<30x8x128xf32, #tpu.memory_space<vmem>>, vector<1x8x128xf32>
    %29 = vector.shape_cast %28 : vector<1x8x128xf32> to vector<8x128xf32>
    %c10_10 = arith.constant 10 : index
    %30 = arith.index_cast %2 : i32 to index
    %c0_11 = arith.constant 0 : index
    %31 = vector.load %arg2[%c10_10, %30, %c0_11] : memref<30x8x128xf32, #tpu.memory_space<vmem>>, vector<1x8x128xf32>
    %32 = vector.shape_cast %31 : vector<1x8x128xf32> to vector<8x128xf32>
    %33 = arith.subf %29, %32 : vector<8x128xf32>
    %34 = arith.mulf %33, %33 : vector<8x128xf32>
    %c11 = arith.constant 11 : index
    %35 = arith.index_cast %2 : i32 to index
    %c0_12 = arith.constant 0 : index
    %36 = vector.load %arg1[%c11, %35, %c0_12] : memref<30x8x128xf32, #tpu.memory_space<vmem>>, vector<1x8x128xf32>
    %37 = vector.shape_cast %36 : vector<1x8x128xf32> to vector<8x128xf32>
    %c11_13 = arith.constant 11 : index
    %38 = arith.index_cast %2 : i32 to index
    %c0_14 = arith.constant 0 : index
    %39 = vector.load %arg2[%c11_13, %38, %c0_14] : memref<30x8x128xf32, #tpu.memory_space<vmem>>, vector<1x8x128xf32>
    %40 = vector.shape_cast %39 : vector<1x8x128xf32> to vector<8x128xf32>
    %41 = arith.subf %37, %40 : vector<8x128xf32>
    %42 = arith.mulf %41, %41 : vector<8x128xf32>
    %43 = arith.addf %34, %42 : vector<8x128xf32>
    %c12 = arith.constant 12 : index
    %44 = arith.index_cast %2 : i32 to index
    %c0_15 = arith.constant 0 : index
    %45 = vector.load %arg1[%c12, %44, %c0_15] : memref<30x8x128xf32, #tpu.memory_space<vmem>>, vector<1x8x128xf32>
    %46 = vector.shape_cast %45 : vector<1x8x128xf32> to vector<8x128xf32>
    %c12_16 = arith.constant 12 : index
    %47 = arith.index_cast %2 : i32 to index
    %c0_17 = arith.constant 0 : index
    %48 = vector.load %arg2[%c12_16, %47, %c0_17] : memref<30x8x128xf32, #tpu.memory_space<vmem>>, vector<1x8x128xf32>
    %49 = vector.shape_cast %48 : vector<1x8x128xf32> to vector<8x128xf32>
    %50 = arith.subf %46, %49 : vector<8x128xf32>
    %51 = arith.mulf %50, %50 : vector<8x128xf32>
    %52 = arith.addf %43, %51 : vector<8x128xf32>
    %c13 = arith.constant 13 : index
    %53 = arith.index_cast %2 : i32 to index
    %c0_18 = arith.constant 0 : index
    %54 = vector.load %arg1[%c13, %53, %c0_18] : memref<30x8x128xf32, #tpu.memory_space<vmem>>, vector<1x8x128xf32>
    %55 = vector.shape_cast %54 : vector<1x8x128xf32> to vector<8x128xf32>
    %c13_19 = arith.constant 13 : index
    %56 = arith.index_cast %2 : i32 to index
    %c0_20 = arith.constant 0 : index
    %57 = vector.load %arg2[%c13_19, %56, %c0_20] : memref<30x8x128xf32, #tpu.memory_space<vmem>>, vector<1x8x128xf32>
    %58 = vector.shape_cast %57 : vector<1x8x128xf32> to vector<8x128xf32>
    %59 = arith.subf %55, %58 : vector<8x128xf32>
    %60 = arith.mulf %59, %59 : vector<8x128xf32>
    %61 = arith.addf %52, %60 : vector<8x128xf32>
    %c14 = arith.constant 14 : index
    %62 = arith.index_cast %2 : i32 to index
    %c0_21 = arith.constant 0 : index
    %63 = vector.load %arg1[%c14, %62, %c0_21] : memref<30x8x128xf32, #tpu.memory_space<vmem>>, vector<1x8x128xf32>
    %64 = vector.shape_cast %63 : vector<1x8x128xf32> to vector<8x128xf32>
    %c14_22 = arith.constant 14 : index
    %65 = arith.index_cast %2 : i32 to index
    %c0_23 = arith.constant 0 : index
    %66 = vector.load %arg2[%c14_22, %65, %c0_23] : memref<30x8x128xf32, #tpu.memory_space<vmem>>, vector<1x8x128xf32>
    %67 = vector.shape_cast %66 : vector<1x8x128xf32> to vector<8x128xf32>
    %68 = arith.subf %64, %67 : vector<8x128xf32>
    %69 = arith.mulf %68, %68 : vector<8x128xf32>
    %70 = arith.addf %61, %69 : vector<8x128xf32>
    %c15 = arith.constant 15 : index
    %71 = arith.index_cast %2 : i32 to index
    %c0_24 = arith.constant 0 : index
    %72 = vector.load %arg1[%c15, %71, %c0_24] : memref<30x8x128xf32, #tpu.memory_space<vmem>>, vector<1x8x128xf32>
    %73 = vector.shape_cast %72 : vector<1x8x128xf32> to vector<8x128xf32>
    %c15_25 = arith.constant 15 : index
    %74 = arith.index_cast %2 : i32 to index
    %c0_26 = arith.constant 0 : index
    %75 = vector.load %arg2[%c15_25, %74, %c0_26] : memref<30x8x128xf32, #tpu.memory_space<vmem>>, vector<1x8x128xf32>
    %76 = vector.shape_cast %75 : vector<1x8x128xf32> to vector<8x128xf32>
    %77 = arith.subf %73, %76 : vector<8x128xf32>
    %78 = arith.mulf %77, %77 : vector<8x128xf32>
    %79 = arith.addf %70, %78 : vector<8x128xf32>
    %c16 = arith.constant 16 : index
    %80 = arith.index_cast %2 : i32 to index
    %c0_27 = arith.constant 0 : index
    %81 = vector.load %arg1[%c16, %80, %c0_27] : memref<30x8x128xf32, #tpu.memory_space<vmem>>, vector<1x8x128xf32>
    %82 = vector.shape_cast %81 : vector<1x8x128xf32> to vector<8x128xf32>
    %c16_28 = arith.constant 16 : index
    %83 = arith.index_cast %2 : i32 to index
    %c0_29 = arith.constant 0 : index
    %84 = vector.load %arg2[%c16_28, %83, %c0_29] : memref<30x8x128xf32, #tpu.memory_space<vmem>>, vector<1x8x128xf32>
    %85 = vector.shape_cast %84 : vector<1x8x128xf32> to vector<8x128xf32>
    %86 = arith.subf %82, %85 : vector<8x128xf32>
    %87 = arith.mulf %86, %86 : vector<8x128xf32>
    %88 = arith.addf %79, %87 : vector<8x128xf32>
    %c17 = arith.constant 17 : index
    %89 = arith.index_cast %2 : i32 to index
    %c0_30 = arith.constant 0 : index
    %90 = vector.load %arg1[%c17, %89, %c0_30] : memref<30x8x128xf32, #tpu.memory_space<vmem>>, vector<1x8x128xf32>
    %91 = vector.shape_cast %90 : vector<1x8x128xf32> to vector<8x128xf32>
    %c17_31 = arith.constant 17 : index
    %92 = arith.index_cast %2 : i32 to index
    %c0_32 = arith.constant 0 : index
    %93 = vector.load %arg2[%c17_31, %92, %c0_32] : memref<30x8x128xf32, #tpu.memory_space<vmem>>, vector<1x8x128xf32>
    %94 = vector.shape_cast %93 : vector<1x8x128xf32> to vector<8x128xf32>
    %95 = arith.subf %91, %94 : vector<8x128xf32>
    %96 = arith.mulf %95, %95 : vector<8x128xf32>
    %97 = arith.addf %88, %96 : vector<8x128xf32>
    %c18 = arith.constant 18 : index
    %98 = arith.index_cast %2 : i32 to index
    %c0_33 = arith.constant 0 : index
    %99 = vector.load %arg1[%c18, %98, %c0_33] : memref<30x8x128xf32, #tpu.memory_space<vmem>>, vector<1x8x128xf32>
    %100 = vector.shape_cast %99 : vector<1x8x128xf32> to vector<8x128xf32>
    %c18_34 = arith.constant 18 : index
    %101 = arith.index_cast %2 : i32 to index
    %c0_35 = arith.constant 0 : index
    %102 = vector.load %arg2[%c18_34, %101, %c0_35] : memref<30x8x128xf32, #tpu.memory_space<vmem>>, vector<1x8x128xf32>
    %103 = vector.shape_cast %102 : vector<1x8x128xf32> to vector<8x128xf32>
    %104 = arith.subf %100, %103 : vector<8x128xf32>
    %105 = arith.mulf %104, %104 : vector<8x128xf32>
    %106 = arith.addf %97, %105 : vector<8x128xf32>
    %c19 = arith.constant 19 : index
    %107 = arith.index_cast %2 : i32 to index
    %c0_36 = arith.constant 0 : index
    %108 = vector.load %arg1[%c19, %107, %c0_36] : memref<30x8x128xf32, #tpu.memory_space<vmem>>, vector<1x8x128xf32>
    %109 = vector.shape_cast %108 : vector<1x8x128xf32> to vector<8x128xf32>
    %c19_37 = arith.constant 19 : index
    %110 = arith.index_cast %2 : i32 to index
    %c0_38 = arith.constant 0 : index
    %111 = vector.load %arg2[%c19_37, %110, %c0_38] : memref<30x8x128xf32, #tpu.memory_space<vmem>>, vector<1x8x128xf32>
    %112 = vector.shape_cast %111 : vector<1x8x128xf32> to vector<8x128xf32>
    %113 = arith.subf %109, %112 : vector<8x128xf32>
    %114 = arith.mulf %113, %113 : vector<8x128xf32>
    %115 = arith.addf %106, %114 : vector<8x128xf32>
    %c20 = arith.constant 20 : index
    %116 = arith.index_cast %2 : i32 to index
    %c0_39 = arith.constant 0 : index
    %117 = vector.load %arg1[%c20, %116, %c0_39] : memref<30x8x128xf32, #tpu.memory_space<vmem>>, vector<1x8x128xf32>
    %118 = vector.shape_cast %117 : vector<1x8x128xf32> to vector<8x128xf32>
    %c20_40 = arith.constant 20 : index
    %119 = arith.index_cast %2 : i32 to index
    %c0_41 = arith.constant 0 : index
    %120 = vector.load %arg2[%c20_40, %119, %c0_41] : memref<30x8x128xf32, #tpu.memory_space<vmem>>, vector<1x8x128xf32>
    %121 = vector.shape_cast %120 : vector<1x8x128xf32> to vector<8x128xf32>
    %122 = arith.subf %118, %121 : vector<8x128xf32>
    %123 = arith.mulf %122, %122 : vector<8x128xf32>
    %124 = arith.addf %115, %123 : vector<8x128xf32>
    %c21 = arith.constant 21 : index
    %125 = arith.index_cast %2 : i32 to index
    %c0_42 = arith.constant 0 : index
    %126 = vector.load %arg1[%c21, %125, %c0_42] : memref<30x8x128xf32, #tpu.memory_space<vmem>>, vector<1x8x128xf32>
    %127 = vector.shape_cast %126 : vector<1x8x128xf32> to vector<8x128xf32>
    %c21_43 = arith.constant 21 : index
    %128 = arith.index_cast %2 : i32 to index
    %c0_44 = arith.constant 0 : index
    %129 = vector.load %arg2[%c21_43, %128, %c0_44] : memref<30x8x128xf32, #tpu.memory_space<vmem>>, vector<1x8x128xf32>
    %130 = vector.shape_cast %129 : vector<1x8x128xf32> to vector<8x128xf32>
    %131 = arith.subf %127, %130 : vector<8x128xf32>
    %132 = arith.mulf %131, %131 : vector<8x128xf32>
    %133 = arith.addf %124, %132 : vector<8x128xf32>
    %c22 = arith.constant 22 : index
    %134 = arith.index_cast %2 : i32 to index
    %c0_45 = arith.constant 0 : index
    %135 = vector.load %arg1[%c22, %134, %c0_45] : memref<30x8x128xf32, #tpu.memory_space<vmem>>, vector<1x8x128xf32>
    %136 = vector.shape_cast %135 : vector<1x8x128xf32> to vector<8x128xf32>
    %c22_46 = arith.constant 22 : index
    %137 = arith.index_cast %2 : i32 to index
    %c0_47 = arith.constant 0 : index
    %138 = vector.load %arg2[%c22_46, %137, %c0_47] : memref<30x8x128xf32, #tpu.memory_space<vmem>>, vector<1x8x128xf32>
    %139 = vector.shape_cast %138 : vector<1x8x128xf32> to vector<8x128xf32>
    %140 = arith.subf %136, %139 : vector<8x128xf32>
    %141 = arith.mulf %140, %140 : vector<8x128xf32>
    %142 = arith.addf %133, %141 : vector<8x128xf32>
    %c23 = arith.constant 23 : index
    %143 = arith.index_cast %2 : i32 to index
    %c0_48 = arith.constant 0 : index
    %144 = vector.load %arg1[%c23, %143, %c0_48] : memref<30x8x128xf32, #tpu.memory_space<vmem>>, vector<1x8x128xf32>
    %145 = vector.shape_cast %144 : vector<1x8x128xf32> to vector<8x128xf32>
    %c23_49 = arith.constant 23 : index
    %146 = arith.index_cast %2 : i32 to index
    %c0_50 = arith.constant 0 : index
    %147 = vector.load %arg2[%c23_49, %146, %c0_50] : memref<30x8x128xf32, #tpu.memory_space<vmem>>, vector<1x8x128xf32>
    %148 = vector.shape_cast %147 : vector<1x8x128xf32> to vector<8x128xf32>
    %149 = arith.subf %145, %148 : vector<8x128xf32>
    %150 = arith.mulf %149, %149 : vector<8x128xf32>
    %151 = arith.addf %142, %150 : vector<8x128xf32>
    %c24 = arith.constant 24 : index
    %152 = arith.index_cast %2 : i32 to index
    %c0_51 = arith.constant 0 : index
    %153 = vector.load %arg1[%c24, %152, %c0_51] : memref<30x8x128xf32, #tpu.memory_space<vmem>>, vector<1x8x128xf32>
    %154 = vector.shape_cast %153 : vector<1x8x128xf32> to vector<8x128xf32>
    %c24_52 = arith.constant 24 : index
    %155 = arith.index_cast %2 : i32 to index
    %c0_53 = arith.constant 0 : index
    %156 = vector.load %arg2[%c24_52, %155, %c0_53] : memref<30x8x128xf32, #tpu.memory_space<vmem>>, vector<1x8x128xf32>
    %157 = vector.shape_cast %156 : vector<1x8x128xf32> to vector<8x128xf32>
    %158 = arith.subf %154, %157 : vector<8x128xf32>
    %159 = arith.mulf %158, %158 : vector<8x128xf32>
    %160 = arith.addf %151, %159 : vector<8x128xf32>
    %c25 = arith.constant 25 : index
    %161 = arith.index_cast %2 : i32 to index
    %c0_54 = arith.constant 0 : index
    %162 = vector.load %arg1[%c25, %161, %c0_54] : memref<30x8x128xf32, #tpu.memory_space<vmem>>, vector<1x8x128xf32>
    %163 = vector.shape_cast %162 : vector<1x8x128xf32> to vector<8x128xf32>
    %c25_55 = arith.constant 25 : index
    %164 = arith.index_cast %2 : i32 to index
    %c0_56 = arith.constant 0 : index
    %165 = vector.load %arg2[%c25_55, %164, %c0_56] : memref<30x8x128xf32, #tpu.memory_space<vmem>>, vector<1x8x128xf32>
    %166 = vector.shape_cast %165 : vector<1x8x128xf32> to vector<8x128xf32>
    %167 = arith.subf %163, %166 : vector<8x128xf32>
    %168 = arith.mulf %167, %167 : vector<8x128xf32>
    %169 = arith.addf %160, %168 : vector<8x128xf32>
    %c26 = arith.constant 26 : index
    %170 = arith.index_cast %2 : i32 to index
    %c0_57 = arith.constant 0 : index
    %171 = vector.load %arg1[%c26, %170, %c0_57] : memref<30x8x128xf32, #tpu.memory_space<vmem>>, vector<1x8x128xf32>
    %172 = vector.shape_cast %171 : vector<1x8x128xf32> to vector<8x128xf32>
    %c26_58 = arith.constant 26 : index
    %173 = arith.index_cast %2 : i32 to index
    %c0_59 = arith.constant 0 : index
    %174 = vector.load %arg2[%c26_58, %173, %c0_59] : memref<30x8x128xf32, #tpu.memory_space<vmem>>, vector<1x8x128xf32>
    %175 = vector.shape_cast %174 : vector<1x8x128xf32> to vector<8x128xf32>
    %176 = arith.subf %172, %175 : vector<8x128xf32>
    %177 = arith.mulf %176, %176 : vector<8x128xf32>
    %178 = arith.addf %169, %177 : vector<8x128xf32>
    %c27 = arith.constant 27 : index
    %179 = arith.index_cast %2 : i32 to index
    %c0_60 = arith.constant 0 : index
    %180 = vector.load %arg1[%c27, %179, %c0_60] : memref<30x8x128xf32, #tpu.memory_space<vmem>>, vector<1x8x128xf32>
    %181 = vector.shape_cast %180 : vector<1x8x128xf32> to vector<8x128xf32>
    %c27_61 = arith.constant 27 : index
    %182 = arith.index_cast %2 : i32 to index
    %c0_62 = arith.constant 0 : index
    %183 = vector.load %arg2[%c27_61, %182, %c0_62] : memref<30x8x128xf32, #tpu.memory_space<vmem>>, vector<1x8x128xf32>
    %184 = vector.shape_cast %183 : vector<1x8x128xf32> to vector<8x128xf32>
    %185 = arith.subf %181, %184 : vector<8x128xf32>
    %186 = arith.mulf %185, %185 : vector<8x128xf32>
    %187 = arith.addf %178, %186 : vector<8x128xf32>
    %c28 = arith.constant 28 : index
    %188 = arith.index_cast %2 : i32 to index
    %c0_63 = arith.constant 0 : index
    %189 = vector.load %arg1[%c28, %188, %c0_63] : memref<30x8x128xf32, #tpu.memory_space<vmem>>, vector<1x8x128xf32>
    %190 = vector.shape_cast %189 : vector<1x8x128xf32> to vector<8x128xf32>
    %c28_64 = arith.constant 28 : index
    %191 = arith.index_cast %2 : i32 to index
    %c0_65 = arith.constant 0 : index
    %192 = vector.load %arg2[%c28_64, %191, %c0_65] : memref<30x8x128xf32, #tpu.memory_space<vmem>>, vector<1x8x128xf32>
    %193 = vector.shape_cast %192 : vector<1x8x128xf32> to vector<8x128xf32>
    %194 = arith.subf %190, %193 : vector<8x128xf32>
    %195 = arith.mulf %194, %194 : vector<8x128xf32>
    %196 = arith.addf %187, %195 : vector<8x128xf32>
    %c29 = arith.constant 29 : index
    %197 = arith.index_cast %2 : i32 to index
    %c0_66 = arith.constant 0 : index
    %198 = vector.load %arg1[%c29, %197, %c0_66] : memref<30x8x128xf32, #tpu.memory_space<vmem>>, vector<1x8x128xf32>
    %199 = vector.shape_cast %198 : vector<1x8x128xf32> to vector<8x128xf32>
    %c29_67 = arith.constant 29 : index
    %200 = arith.index_cast %2 : i32 to index
    %c0_68 = arith.constant 0 : index
    %201 = vector.load %arg2[%c29_67, %200, %c0_68] : memref<30x8x128xf32, #tpu.memory_space<vmem>>, vector<1x8x128xf32>
    %202 = vector.shape_cast %201 : vector<1x8x128xf32> to vector<8x128xf32>
    %203 = arith.subf %199, %202 : vector<8x128xf32>
    %204 = arith.mulf %203, %203 : vector<8x128xf32>
    %205 = arith.addf %196, %204 : vector<8x128xf32>
    %c0_69 = arith.constant 0 : index
    %206 = arith.index_cast %2 : i32 to index
    %c0_70 = arith.constant 0 : index
    %207 = vector.load %arg2[%c0_69, %206, %c0_70] : memref<30x8x128xf32, #tpu.memory_space<vmem>>, vector<1x8x128xf32>
    %208 = vector.shape_cast %207 : vector<1x8x128xf32> to vector<8x128xf32>
    %c1 = arith.constant 1 : index
    %209 = arith.index_cast %2 : i32 to index
    %c0_71 = arith.constant 0 : index
    %210 = vector.load %arg2[%c1, %209, %c0_71] : memref<30x8x128xf32, #tpu.memory_space<vmem>>, vector<1x8x128xf32>
    %211 = vector.shape_cast %210 : vector<1x8x128xf32> to vector<8x128xf32>
    %c2 = arith.constant 2 : index
    %212 = arith.index_cast %2 : i32 to index
    %c0_72 = arith.constant 0 : index
    %213 = vector.load %arg2[%c2, %212, %c0_72] : memref<30x8x128xf32, #tpu.memory_space<vmem>>, vector<1x8x128xf32>
    %214 = vector.shape_cast %213 : vector<1x8x128xf32> to vector<8x128xf32>
    %c3 = arith.constant 3 : index
    %215 = arith.index_cast %2 : i32 to index
    %c0_73 = arith.constant 0 : index
    %216 = vector.load %arg2[%c3, %215, %c0_73] : memref<30x8x128xf32, #tpu.memory_space<vmem>>, vector<1x8x128xf32>
    %217 = vector.shape_cast %216 : vector<1x8x128xf32> to vector<8x128xf32>
    %cst_74 = arith.constant 0.142857149 : f32
    %218 = vector.broadcast %cst_74 : f32 to vector<8x128xf32>
    %219 = arith.mulf %208, %218 : vector<8x128xf32>
    %cst_75 = arith.constant 0.142857149 : f32
    %220 = vector.broadcast %cst_75 : f32 to vector<8x128xf32>
    %221 = arith.mulf %211, %220 : vector<8x128xf32>
    %cst_76 = arith.constant 5.000000e-01 : f32
    %222 = vector.broadcast %cst_76 : f32 to vector<8x128xf32>
    %223 = arith.mulf %222, %214 : vector<8x128xf32>
    %224 = arith.subf %219, %223 : vector<8x128xf32>
    %cst_77 = arith.constant 5.000000e-01 : f32
    %225 = vector.broadcast %cst_77 : f32 to vector<8x128xf32>
    %226 = arith.mulf %225, %214 : vector<8x128xf32>
    %227 = arith.addf %219, %226 : vector<8x128xf32>
    %cst_78 = arith.constant 5.000000e-01 : f32
    %228 = vector.broadcast %cst_78 : f32 to vector<8x128xf32>
    %229 = arith.mulf %228, %217 : vector<8x128xf32>
    %230 = arith.subf %221, %229 : vector<8x128xf32>
    %cst_79 = arith.constant 5.000000e-01 : f32
    %231 = vector.broadcast %cst_79 : f32 to vector<8x128xf32>
    %232 = arith.mulf %231, %217 : vector<8x128xf32>
    %233 = arith.addf %221, %232 : vector<8x128xf32>
    %234 = arith.mulf %214, %217 : vector<8x128xf32>
    %c0_80 = arith.constant 0 : index
    %235 = arith.index_cast %2 : i32 to index
    %c0_81 = arith.constant 0 : index
    %236 = vector.load %arg1[%c0_80, %235, %c0_81] : memref<30x8x128xf32, #tpu.memory_space<vmem>>, vector<1x8x128xf32>
    %237 = vector.shape_cast %236 : vector<1x8x128xf32> to vector<8x128xf32>
    %c1_82 = arith.constant 1 : index
    %238 = arith.index_cast %2 : i32 to index
    %c0_83 = arith.constant 0 : index
    %239 = vector.load %arg1[%c1_82, %238, %c0_83] : memref<30x8x128xf32, #tpu.memory_space<vmem>>, vector<1x8x128xf32>
    %240 = vector.shape_cast %239 : vector<1x8x128xf32> to vector<8x128xf32>
    %c2_84 = arith.constant 2 : index
    %241 = arith.index_cast %2 : i32 to index
    %c0_85 = arith.constant 0 : index
    %242 = vector.load %arg1[%c2_84, %241, %c0_85] : memref<30x8x128xf32, #tpu.memory_space<vmem>>, vector<1x8x128xf32>
    %243 = vector.shape_cast %242 : vector<1x8x128xf32> to vector<8x128xf32>
    %c3_86 = arith.constant 3 : index
    %244 = arith.index_cast %2 : i32 to index
    %c0_87 = arith.constant 0 : index
    %245 = vector.load %arg1[%c3_86, %244, %c0_87] : memref<30x8x128xf32, #tpu.memory_space<vmem>>, vector<1x8x128xf32>
    %246 = vector.shape_cast %245 : vector<1x8x128xf32> to vector<8x128xf32>
    %c5 = arith.constant 5 : index
    %247 = arith.index_cast %2 : i32 to index
    %c0_88 = arith.constant 0 : index
    %248 = vector.load %arg1[%c5, %247, %c0_88] : memref<30x8x128xf32, #tpu.memory_space<vmem>>, vector<1x8x128xf32>
    %249 = vector.shape_cast %248 : vector<1x8x128xf32> to vector<8x128xf32>
    %c6 = arith.constant 6 : index
    %250 = arith.index_cast %2 : i32 to index
    %c0_89 = arith.constant 0 : index
    %251 = vector.load %arg1[%c6, %250, %c0_89] : memref<30x8x128xf32, #tpu.memory_space<vmem>>, vector<1x8x128xf32>
    %252 = vector.shape_cast %251 : vector<1x8x128xf32> to vector<8x128xf32>
    %c7 = arith.constant 7 : index
    %253 = arith.index_cast %2 : i32 to index
    %c0_90 = arith.constant 0 : index
    %254 = vector.load %arg1[%c7, %253, %c0_90] : memref<30x8x128xf32, #tpu.memory_space<vmem>>, vector<1x8x128xf32>
    %255 = vector.shape_cast %254 : vector<1x8x128xf32> to vector<8x128xf32>
    %c8 = arith.constant 8 : index
    %256 = arith.index_cast %2 : i32 to index
    %c0_91 = arith.constant 0 : index
    %257 = vector.load %arg1[%c8, %256, %c0_91] : memref<30x8x128xf32, #tpu.memory_space<vmem>>, vector<1x8x128xf32>
    %258 = vector.shape_cast %257 : vector<1x8x128xf32> to vector<8x128xf32>
    %cst_92 = arith.constant 0.142857149 : f32
    %259 = vector.broadcast %cst_92 : f32 to vector<8x128xf32>
    %260 = arith.mulf %237, %259 : vector<8x128xf32>
    %cst_93 = arith.constant 0.142857149 : f32
    %261 = vector.broadcast %cst_93 : f32 to vector<8x128xf32>
    %262 = arith.mulf %240, %261 : vector<8x128xf32>
    %cst_94 = arith.constant 5.000000e-01 : f32
    %263 = vector.broadcast %cst_94 : f32 to vector<8x128xf32>
    %264 = arith.mulf %263, %243 : vector<8x128xf32>
    %265 = arith.subf %260, %264 : vector<8x128xf32>
    %cst_95 = arith.constant 5.000000e-01 : f32
    %266 = vector.broadcast %cst_95 : f32 to vector<8x128xf32>
    %267 = arith.mulf %266, %243 : vector<8x128xf32>
    %268 = arith.addf %260, %267 : vector<8x128xf32>
    %cst_96 = arith.constant 5.000000e-01 : f32
    %269 = vector.broadcast %cst_96 : f32 to vector<8x128xf32>
    %270 = arith.mulf %269, %246 : vector<8x128xf32>
    %271 = arith.subf %262, %270 : vector<8x128xf32>
    %cst_97 = arith.constant 5.000000e-01 : f32
    %272 = vector.broadcast %cst_97 : f32 to vector<8x128xf32>
    %273 = arith.mulf %272, %246 : vector<8x128xf32>
    %274 = arith.addf %262, %273 : vector<8x128xf32>
    %275 = arith.minimumf %268, %227 : vector<8x128xf32>
    %276 = arith.maximumf %265, %224 : vector<8x128xf32>
    %277 = arith.subf %275, %276 : vector<8x128xf32>
    %cst_98 = arith.constant 0.000000e+00 : f32
    %278 = vector.broadcast %cst_98 : f32 to vector<8x128xf32>
    %279 = arith.maximumf %277, %278 : vector<8x128xf32>
    %280 = arith.minimumf %274, %233 : vector<8x128xf32>
    %281 = arith.maximumf %271, %230 : vector<8x128xf32>
    %282 = arith.subf %280, %281 : vector<8x128xf32>
    %cst_99 = arith.constant 0.000000e+00 : f32
    %283 = vector.broadcast %cst_99 : f32 to vector<8x128xf32>
    %284 = arith.maximumf %282, %283 : vector<8x128xf32>
    %285 = arith.mulf %279, %284 : vector<8x128xf32>
    %286 = arith.mulf %243, %246 : vector<8x128xf32>
    %287 = arith.addf %286, %234 : vector<8x128xf32>
    %288 = arith.subf %287, %285 : vector<8x128xf32>
    %cst_100 = arith.constant 0.000000e+00 : f32
    %289 = vector.broadcast %cst_100 : f32 to vector<8x128xf32>
    %290 = arith.cmpf one, %288, %289 : vector<8x128xf32>
    %cst_101 = arith.constant 1.000000e+00 : f32
    %291 = vector.broadcast %cst_101 : f32 to vector<8x128xf32>
    %292 = arith.select %290, %288, %291 : vector<8x128xi1>, vector<8x128xf32>
    %293 = tpu.reciprocal %292 {approx = true} : vector<8x128xf32> -> vector<8x128xf32>
    %294 = arith.mulf %292, %293 : vector<8x128xf32>
    %cst_102 = arith.constant 2.000000e+00 : f32
    %295 = vector.broadcast %cst_102 : f32 to vector<8x128xf32>
    %296 = arith.subf %295, %294 : vector<8x128xf32>
    %297 = arith.mulf %293, %296 : vector<8x128xf32>
    %298 = arith.mulf %285, %297 : vector<8x128xf32>
    %cst_103 = arith.constant 0.142857149 : f32
    %299 = vector.broadcast %cst_103 : f32 to vector<8x128xf32>
    %300 = arith.mulf %249, %299 : vector<8x128xf32>
    %cst_104 = arith.constant 0.142857149 : f32
    %301 = vector.broadcast %cst_104 : f32 to vector<8x128xf32>
    %302 = arith.mulf %252, %301 : vector<8x128xf32>
    %cst_105 = arith.constant 5.000000e-01 : f32
    %303 = vector.broadcast %cst_105 : f32 to vector<8x128xf32>
    %304 = arith.mulf %303, %255 : vector<8x128xf32>
    %305 = arith.subf %300, %304 : vector<8x128xf32>
    %cst_106 = arith.constant 5.000000e-01 : f32
    %306 = vector.broadcast %cst_106 : f32 to vector<8x128xf32>
    %307 = arith.mulf %306, %255 : vector<8x128xf32>
    %308 = arith.addf %300, %307 : vector<8x128xf32>
    %cst_107 = arith.constant 5.000000e-01 : f32
    %309 = vector.broadcast %cst_107 : f32 to vector<8x128xf32>
    %310 = arith.mulf %309, %258 : vector<8x128xf32>
    %311 = arith.subf %302, %310 : vector<8x128xf32>
    %cst_108 = arith.constant 5.000000e-01 : f32
    %312 = vector.broadcast %cst_108 : f32 to vector<8x128xf32>
    %313 = arith.mulf %312, %258 : vector<8x128xf32>
    %314 = arith.addf %302, %313 : vector<8x128xf32>
    %315 = arith.minimumf %308, %227 : vector<8x128xf32>
    %316 = arith.maximumf %305, %224 : vector<8x128xf32>
    %317 = arith.subf %315, %316 : vector<8x128xf32>
    %cst_109 = arith.constant 0.000000e+00 : f32
    %318 = vector.broadcast %cst_109 : f32 to vector<8x128xf32>
    %319 = arith.maximumf %317, %318 : vector<8x128xf32>
    %320 = arith.minimumf %314, %233 : vector<8x128xf32>
    %321 = arith.maximumf %311, %230 : vector<8x128xf32>
    %322 = arith.subf %320, %321 : vector<8x128xf32>
    %cst_110 = arith.constant 0.000000e+00 : f32
    %323 = vector.broadcast %cst_110 : f32 to vector<8x128xf32>
    %324 = arith.maximumf %322, %323 : vector<8x128xf32>
    %325 = arith.mulf %319, %324 : vector<8x128xf32>
    %326 = arith.mulf %255, %258 : vector<8x128xf32>
    %327 = arith.addf %326, %234 : vector<8x128xf32>
    %328 = arith.subf %327, %325 : vector<8x128xf32>
    %cst_111 = arith.constant 0.000000e+00 : f32
    %329 = vector.broadcast %cst_111 : f32 to vector<8x128xf32>
    %330 = arith.cmpf one, %328, %329 : vector<8x128xf32>
    %cst_112 = arith.constant 1.000000e+00 : f32
    %331 = vector.broadcast %cst_112 : f32 to vector<8x128xf32>
    %332 = arith.select %330, %328, %331 : vector<8x128xi1>, vector<8x128xf32>
    %333 = tpu.reciprocal %332 {approx = true} : vector<8x128xf32> -> vector<8x128xf32>
    %334 = arith.mulf %332, %333 : vector<8x128xf32>
    %cst_113 = arith.constant 2.000000e+00 : f32
    %335 = vector.broadcast %cst_113 : f32 to vector<8x128xf32>
    %336 = arith.subf %335, %334 : vector<8x128xf32>
    %337 = arith.mulf %333, %336 : vector<8x128xf32>
    %338 = arith.mulf %325, %337 : vector<8x128xf32>
    %339 = arith.cmpf ogt, %338, %298 : vector<8x128xf32>
    %340 = arith.maximumf %298, %338 : vector<8x128xf32>
    %341 = arith.select %339, %249, %237 : vector<8x128xi1>, vector<8x128xf32>
    %342 = arith.select %339, %252, %240 : vector<8x128xi1>, vector<8x128xf32>
    %343 = arith.select %339, %255, %243 : vector<8x128xi1>, vector<8x128xf32>
    %344 = arith.select %339, %258, %246 : vector<8x128xi1>, vector<8x128xf32>
    %345 = arith.select %339, %18, %15 : vector<8x128xi1>, vector<8x128xf32>
    %346 = arith.subf %341, %208 : vector<8x128xf32>
    %347 = arith.mulf %346, %346 : vector<8x128xf32>
    %348 = arith.subf %342, %211 : vector<8x128xf32>
    %349 = arith.mulf %348, %348 : vector<8x128xf32>
    %350 = arith.addf %347, %349 : vector<8x128xf32>
    %cst_114 = arith.constant 0.000000e+00 : f32
    %351 = vector.broadcast %cst_114 : f32 to vector<8x128xf32>
    %352 = arith.maximumf %343, %351 : vector<8x128xf32>
    %353 = math.sqrt %352 : vector<8x128xf32>
    %cst_115 = arith.constant 0.000000e+00 : f32
    %354 = vector.broadcast %cst_115 : f32 to vector<8x128xf32>
    %355 = arith.maximumf %214, %354 : vector<8x128xf32>
    %356 = math.sqrt %355 : vector<8x128xf32>
    %357 = arith.subf %353, %356 : vector<8x128xf32>
    %358 = arith.mulf %357, %357 : vector<8x128xf32>
    %359 = arith.addf %350, %358 : vector<8x128xf32>
    %cst_116 = arith.constant 0.000000e+00 : f32
    %360 = vector.broadcast %cst_116 : f32 to vector<8x128xf32>
    %361 = arith.maximumf %344, %360 : vector<8x128xf32>
    %362 = math.sqrt %361 : vector<8x128xf32>
    %cst_117 = arith.constant 0.000000e+00 : f32
    %363 = vector.broadcast %cst_117 : f32 to vector<8x128xf32>
    %364 = arith.maximumf %217, %363 : vector<8x128xf32>
    %365 = math.sqrt %364 : vector<8x128xf32>
    %366 = arith.subf %362, %365 : vector<8x128xf32>
    %367 = arith.mulf %366, %366 : vector<8x128xf32>
    %368 = arith.addf %359, %367 : vector<8x128xf32>
    %369 = arith.subf %345, %340 : vector<8x128xf32>
    %370 = arith.mulf %369, %369 : vector<8x128xf32>
    %cst_118 = arith.constant 5.000000e+00 : f32
    %371 = vector.broadcast %cst_118 : f32 to vector<8x128xf32>
    %372 = arith.mulf %371, %368 : vector<8x128xf32>
    %373 = arith.addf %372, %370 : vector<8x128xf32>
    %374 = arith.addf %373, %205 : vector<8x128xf32>
    %375 = arith.mulf %10, %374 : vector<8x128xf32>
    %376 = arith.mulf %12, %26 : vector<8x128xf32>
    %cst_119 = arith.constant 5.000000e-01 : f32
    %377 = vector.broadcast %cst_119 : f32 to vector<8x128xf32>
    %378 = arith.mulf %377, %376 : vector<8x128xf32>
    %379 = arith.addf %375, %378 : vector<8x128xf32>
    %380 = arith.addf %0, %379 : vector<8x128xf32>
    %c1_i32 = arith.constant 1 : i32
    %c0_120 = arith.constant 0 : index
    %c0_121 = arith.constant 0 : index
    %381 = vector.load %arg3[%c0_120, %c0_121] : memref<8x128xf32, #tpu.memory_space<vmem>>, vector<8x128xf32>
    tpu.vector_store %arg3[%c0_120, %c0_121], %380 {strides = array<i32>} : memref<8x128xf32, #tpu.memory_space<vmem>>, vector<8x128xf32>,
    return
  }
  func.func @transform_0(%arg0: i32) -> (i32, i32, i32) {
    %c0_i32 = arith.constant 0 : i32
    %c0_i32_0 = arith.constant 0 : i32
    %c0_i32_1 = arith.constant 0 : i32
    return %c0_i32, %arg0, %c0_i32_0 : i32, i32, i32
  }
  func.func @transform_1(%arg0: i32) -> (i32, i32, i32) {
    %c0_i32 = arith.constant 0 : i32
    %c0_i32_0 = arith.constant 0 : i32
    %c0_i32_1 = arith.constant 0 : i32
    return %c0_i32, %arg0, %c0_i32_0 : i32, i32, i32
  }
  func.func @transform_2(%arg0: i32) -> (i32, i32) {
    %c0_i32 = arith.constant 0 : i32
    %c0_i32_0 = arith.constant 0 : i32
    return %arg0, %c0_i32 : i32, i32
  }
}

</mosaic_0001>

<llo_original>
// kernel: tpu_custom_call.1
$region0: #{tpu_custom_call.1}
  #allocation0 [shape = 'u32[]', space=smem, size = 0x4, offset = 0x4, fixed_abs, tag = 'smem constant byte address 0x4 - core index']
  #allocation1 [shape = 'u32[144,128]{1,0:T(1,128)}', space=vmem, size = 0x12000, scoped, tag = 'internal scratch']
  %s0 = inlined_call_operand.hbm [shape: f32[30,8,128], index: 0, kind: input, shape index: {}]
  %s1 = inlined_call_operand.hbm [shape: f32[30,8,128], index: 1, kind: input, shape index: {}]
  %s2 = inlined_call_operand.hbm [shape: f32[8,128], index: 2, kind: output, shape index: {}]
  %s3 = sld [smem:[#allocation0]]
  $region26: #{tpu_custom_call.1} parent=0
    _
  %s5 = ssub.s32 1, %s3
  %s6 = scalar_select 0, %s5, %s3
  $region1: #{tpu_custom_call.1} parent=0
    #allocation2 [shape = 'u8[122880]{0}', space=vmem, size = 0x1e000, scoped, tag = 'input window, operand 0, single buffered']
    #allocation3 [shape = 's32[1]{0}', space=sflag, size = 0x4, scoped, tag = 'scoped memory for tpu_custom_call.1']
    #allocation4 [shape = 's32[1]{0}', space=sflag, size = 0x4, scoped, tag = 'scoped memory for tpu_custom_call.1']
    #allocation5 [shape = 'u8[122880]{0}', space=vmem, size = 0x1e000, scoped, tag = 'input window, operand 1, single buffered']
    #allocation6 [shape = 's32[1]{0}', space=sflag, size = 0x4, scoped, tag = 'scoped memory for tpu_custom_call.1']
    #allocation7 [shape = 'u8[4096]{0}', space=vmem, size = 0x1000, scoped, tag = 'output window, operand 0, single buffered']
    %7 = vsyncpa [#allocation3], 0
    %8 = vsyncpa [#allocation6], 0
    %9 = vsyncpa [#allocation4], 0
    // Predicated region
    $region2: #{tpu_custom_call.1} parent=1 // pred_check
      _
    $region3: #{tpu_custom_call.1} parent=1 // pred_check_branch
      %11 = sbr.rel (0) target = $region5
    $region4: #{tpu_custom_call.1} parent=1 // pred_region
      %s13 = ssub.s32 3840, 3840
      %14 = vsyncadd [#allocation3], %s13
      %s15 = sshll.u32 [#allocation2], 4
      %s16 = int_to_ptr.vmem [resolvable:$true] %s15
      %21 = dma.hbm_to_vmem [thread:$0]  %s0, 3840, %s16, [#allocation3], 128, 128, 8
    $region5: #{tpu_custom_call.1} parent=1 // pred_fallthru
      _
    // Predicated region
    $region6: #{tpu_custom_call.1} parent=1 // pred_check
      _
    $region7: #{tpu_custom_call.1} parent=1 // pred_check_branch
      %23 = sbr.rel (0) target = $region9
    $region8: #{tpu_custom_call.1} parent=1 // pred_region
      %s25 = ssub.s32 3840, 3840
      %26 = vsyncadd [#allocation6], %s25
      %s27 = sshll.u32 [#allocation5], 4
      %s28 = int_to_ptr.vmem [resolvable:$true] %s27
      %33 = dma.hbm_to_vmem [thread:$0]  %s1, 3840, %s28, [#allocation6], 128, 128, 8
    $region9: #{tpu_custom_call.1} parent=1 // pred_fallthru
      _
    // Predicated region
    $region10: #{tpu_custom_call.1} parent=1 // pred_check
      _
    $region11: #{tpu_custom_call.1} parent=1 // pred_check_branch
      %35 = sbr.rel (0) target = $region13
    $region12: #{tpu_custom_call.1} parent=1 // pred_region
      %36 = dma.done [#allocation3], 3840
    $region13: #{tpu_custom_call.1} parent=1 // pred_fallthru
      _
    // Predicated region
    $region14: #{tpu_custom_call.1} parent=1 // pred_check
      _
    $region15: #{tpu_custom_call.1} parent=1 // pred_check_branch
      %38 = sbr.rel (0) target = $region17
    $region16: #{tpu_custom_call.1} parent=1 // pred_region
      %39 = dma.done [#allocation6], 3840
    $region17: #{tpu_custom_call.1} parent=1 // pred_fallthru
      _
    %s40 = sadd.s32 0, 32
    %s41 = scalar_lea.vmem [#allocation5], %s40
    %v42 = vld [vmem:[%s41] sm:$0xff]
    %vm43 = vcmp.gt.f32.partialorder %v42, 0.0
    %v44 = vsel %vm43, 1.0, 0.0
    %v45 = vsub.f32 1.0, %v44
    %s46 = scalar_lea.vmem [#allocation2], %s40
    %v47 = vld [vmem:[%s46] sm:$0xff]
    %s48 = sadd.s32 0, 72
    %s49 = scalar_lea.vmem [#allocation2], %s48
    %v50 = vld [vmem:[%s49] sm:$0xff]
    %s51 = scalar_lea.vmem [#allocation5], %s48
    %v52 = vld [vmem:[%s51] sm:$0xff]
    %v53 = vsub.f32 %v47, %v42
    %v54 = vmul.f32 %v53, %v53
    %v55 = vsub.f32 %v50, %v52
    %v56 = vmul.f32 %v55, %v55
    %v57 = vadd.f32 %v54, %v56
    %s58 = sadd.s32 0, 80
    %s59 = scalar_lea.vmem [#allocation2], %s58
    %v60 = vld [vmem:[%s59] sm:$0xff]
    %s61 = scalar_lea.vmem [#allocation5], %s58
    %v62 = vld [vmem:[%s61] sm:$0xff]
    %v63 = vsub.f32 %v60, %v62
    %v64 = vmul.f32 %v63, %v63
    %s65 = sadd.s32 0, 88
    %s66 = scalar_lea.vmem [#allocation2], %s65
    %v67 = vld [vmem:[%s66] sm:$0xff]
    %s68 = scalar_lea.vmem [#allocation5], %s65
    %v69 = vld [vmem:[%s68] sm:$0xff]
    %v70 = vsub.f32 %v67, %v69
    %v71 = vmul.f32 %v70, %v70
    %v72 = vadd.f32 %v64, %v71
    %s73 = sadd.s32 0, 96
    %s74 = scalar_lea.vmem [#allocation2], %s73
    %v75 = vld [vmem:[%s74] sm:$0xff]
    %s76 = scalar_lea.vmem [#allocation5], %s73
    %v77 = vld [vmem:[%s76] sm:$0xff]
    %v78 = vsub.f32 %v75, %v77
    %v79 = vmul.f32 %v78, %v78
    %v80 = vadd.f32 %v72, %v79
    %s81 = sadd.s32 0, 104
    %s82 = scalar_lea.vmem [#allocation2], %s81
    %v83 = vld [vmem:[%s82] sm:$0xff]
    %s84 = scalar_lea.vmem [#allocation5], %s81
    %v85 = vld [vmem:[%s84] sm:$0xff]
    %v86 = vsub.f32 %v83, %v85
    %v87 = vmul.f32 %v86, %v86
    %v88 = vadd.f32 %v80, %v87
    %s89 = sadd.s32 0, 112
    %s90 = scalar_lea.vmem [#allocation2], %s89
    %v91 = vld [vmem:[%s90] sm:$0xff]
    %s92 = scalar_lea.vmem [#allocation5], %s89
    %v93 = vld [vmem:[%s92] sm:$0xff]
    %v94 = vsub.f32 %v91, %v93
    %v95 = vmul.f32 %v94, %v94
    %v96 = vadd.f32 %v88, %v95
    %s97 = sadd.s32 0, 120
    %s98 = scalar_lea.vmem [#allocation2], %s97
    %v99 = vld [vmem:[%s98] sm:$0xff]
    %s100 = scalar_lea.vmem [#allocation5], %s97
    %v101 = vld [vmem:[%s100] sm:$0xff]
    %v102 = vsub.f32 %v99, %v101
    %v103 = vmul.f32 %v102, %v102
    %v104 = vadd.f32 %v96, %v103
    %s105 = sadd.s32 0, 128
    %s106 = scalar_lea.vmem [#allocation2], %s105
    %v107 = vld [vmem:[%s106] sm:$0xff]
    %s108 = scalar_lea.vmem [#allocation5], %s105
    %v109 = vld [vmem:[%s108] sm:$0xff]
    %v110 = vsub.f32 %v107, %v109
    %v111 = vmul.f32 %v110, %v110
    %v112 = vadd.f32 %v104, %v111
    %s113 = sadd.s32 0, 136
    %s114 = scalar_lea.vmem [#allocation2], %s113
    %v115 = vld [vmem:[%s114] sm:$0xff]
    %s116 = scalar_lea.vmem [#allocation5], %s113
    %v117 = vld [vmem:[%s116] sm:$0xff]
    %v118 = vsub.f32 %v115, %v117
    %v119 = vmul.f32 %v118, %v118
    %v120 = vadd.f32 %v112, %v119
    %s121 = sadd.s32 0, 144
    %s122 = scalar_lea.vmem [#allocation2], %s121
    %v123 = vld [vmem:[%s122] sm:$0xff]
    %s124 = scalar_lea.vmem [#allocation5], %s121
    %v125 = vld [vmem:[%s124] sm:$0xff]
    %v126 = vsub.f32 %v123, %v125
    %v127 = vmul.f32 %v126, %v126
    %v128 = vadd.f32 %v120, %v127
    %s129 = sadd.s32 0, 152
    %s130 = scalar_lea.vmem [#allocation2], %s129
    %v131 = vld [vmem:[%s130] sm:$0xff]
    %s132 = scalar_lea.vmem [#allocation5], %s129
    %v133 = vld [vmem:[%s132] sm:$0xff]
    %v134 = vsub.f32 %v131, %v133
    %v135 = vmul.f32 %v134, %v134
    %v136 = vadd.f32 %v128, %v135
    %s137 = sadd.s32 0, 160
    %s138 = scalar_lea.vmem [#allocation2], %s137
    %v139 = vld [vmem:[%s138] sm:$0xff]
    %s140 = scalar_lea.vmem [#allocation5], %s137
    %v141 = vld [vmem:[%s140] sm:$0xff]
    %v142 = vsub.f32 %v139, %v141
    %v143 = vmul.f32 %v142, %v142
    %v144 = vadd.f32 %v136, %v143
    %s145 = sadd.s32 0, 168
    %s146 = scalar_lea.vmem [#allocation2], %s145
    %v147 = vld [vmem:[%s146] sm:$0xff]
    %s148 = scalar_lea.vmem [#allocation5], %s145
    %v149 = vld [vmem:[%s148] sm:$0xff]
    %v150 = vsub.f32 %v147, %v149
    %v151 = vmul.f32 %v150, %v150
    %v152 = vadd.f32 %v144, %v151
    %s153 = sadd.s32 0, 176
    %s154 = scalar_lea.vmem [#allocation2], %s153
    %v155 = vld [vmem:[%s154] sm:$0xff]
    %s156 = scalar_lea.vmem [#allocation5], %s153
    %v157 = vld [vmem:[%s156] sm:$0xff]
    %v158 = vsub.f32 %v155, %v157
    %v159 = vmul.f32 %v158, %v158
    %v160 = vadd.f32 %v152, %v159
    %s161 = sadd.s32 0, 184
    %s162 = scalar_lea.vmem [#allocation2], %s161
    %v163 = vld [vmem:[%s162] sm:$0xff]
    %s164 = scalar_lea.vmem [#allocation5], %s161
    %v165 = vld [vmem:[%s164] sm:$0xff]
    %v166 = vsub.f32 %v163, %v165
    %v167 = vmul.f32 %v166, %v166
    %v168 = vadd.f32 %v160, %v167
    %s169 = sadd.s32 0, 192
    %s170 = scalar_lea.vmem [#allocation2], %s169
    %v171 = vld [vmem:[%s170] sm:$0xff]
    %s172 = scalar_lea.vmem [#allocation5], %s169
    %v173 = vld [vmem:[%s172] sm:$0xff]
    %v174 = vsub.f32 %v171, %v173
    %v175 = vmul.f32 %v174, %v174
    %v176 = vadd.f32 %v168, %v175
    %s177 = sadd.s32 0, 200
    %s178 = scalar_lea.vmem [#allocation2], %s177
    %v179 = vld [vmem:[%s178] sm:$0xff]
    %s180 = scalar_lea.vmem [#allocation5], %s177
    %v181 = vld [vmem:[%s180] sm:$0xff]
    %v182 = vsub.f32 %v179, %v181
    %v183 = vmul.f32 %v182, %v182
    %v184 = vadd.f32 %v176, %v183
    %s185 = sadd.s32 0, 208
    %s186 = scalar_lea.vmem [#allocation2], %s185
    %v187 = vld [vmem:[%s186] sm:$0xff]
    %s188 = scalar_lea.vmem [#allocation5], %s185
    %v189 = vld [vmem:[%s188] sm:$0xff]
    %v190 = vsub.f32 %v187, %v189
    %v191 = vmul.f32 %v190, %v190
    %v192 = vadd.f32 %v184, %v191
    %s193 = sadd.s32 0, 216
    %s194 = scalar_lea.vmem [#allocation2], %s193
    %v195 = vld [vmem:[%s194] sm:$0xff]
    %s196 = scalar_lea.vmem [#allocation5], %s193
    %v197 = vld [vmem:[%s196] sm:$0xff]
    %v198 = vsub.f32 %v195, %v197
    %v199 = vmul.f32 %v198, %v198
    %v200 = vadd.f32 %v192, %v199
    %s201 = sadd.s32 0, 224
    %s202 = scalar_lea.vmem [#allocation2], %s201
    %v203 = vld [vmem:[%s202] sm:$0xff]
    %s204 = scalar_lea.vmem [#allocation5], %s201
    %v205 = vld [vmem:[%s204] sm:$0xff]
    %v206 = vsub.f32 %v203, %v205
    %v207 = vmul.f32 %v206, %v206
    %v208 = vadd.f32 %v200, %v207
    %s209 = sadd.s32 0, 232
    %s210 = scalar_lea.vmem [#allocation2], %s209
    %v211 = vld [vmem:[%s210] sm:$0xff]
    %s212 = scalar_lea.vmem [#allocation5], %s209
    %v213 = vld [vmem:[%s212] sm:$0xff]
    %v214 = vsub.f32 %v211, %v213
    %v215 = vmul.f32 %v214, %v214
    %v216 = vadd.f32 %v208, %v215
    %v217 = vld [vmem:[#allocation5] sm:$0xff]
    %s218 = sadd.s32 0, 8
    %s219 = scalar_lea.vmem [#allocation5], %s218
    %v220 = vld [vmem:[%s219] sm:$0xff]
    %s221 = sadd.s32 0, 16
    %s222 = scalar_lea.vmem [#allocation5], %s221
    %v223 = vld [vmem:[%s222] sm:$0xff]
    %s224 = sadd.s32 0, 24
    %s225 = scalar_lea.vmem [#allocation5], %s224
    %v226 = vld [vmem:[%s225] sm:$0xff]
    %v227 = vmul.f32 %v217, 0.14285715
    %v228 = vmul.f32 %v220, 0.14285715
    %v229 = vmul.f32 %v223, 0.5
    %v230 = vsub.f32 %v227, %v229
    %v231 = vadd.f32 %v227, %v229
    %v232 = vmul.f32 %v226, 0.5
    %v233 = vsub.f32 %v228, %v232
    %v234 = vadd.f32 %v228, %v232
    %v235 = vmul.f32 %v223, %v226
    %v236 = vld [vmem:[#allocation2] sm:$0xff]
    %s237 = scalar_lea.vmem [#allocation2], %s218
    %v238 = vld [vmem:[%s237] sm:$0xff]
    %s239 = scalar_lea.vmem [#allocation2], %s221
    %v240 = vld [vmem:[%s239] sm:$0xff]
    %s241 = scalar_lea.vmem [#allocation2], %s224
    %v242 = vld [vmem:[%s241] sm:$0xff]
    %s243 = sadd.s32 0, 40
    %s244 = scalar_lea.vmem [#allocation2], %s243
    %v245 = vld [vmem:[%s244] sm:$0xff]
    %s246 = sadd.s32 0, 48
    %s247 = scalar_lea.vmem [#allocation2], %s246
    %v248 = vld [vmem:[%s247] sm:$0xff]
    %s249 = sadd.s32 0, 56
    %s250 = scalar_lea.vmem [#allocation2], %s249
    %v251 = vld [vmem:[%s250] sm:$0xff]
    %s252 = sadd.s32 0, 64
    %s253 = scalar_lea.vmem [#allocation2], %s252
    %v254 = vld [vmem:[%s253] sm:$0xff]
    %v255 = vmul.f32 %v236, 0.14285715
    %v256 = vmul.f32 %v238, 0.14285715
    %v257 = vmul.f32 %v240, 0.5
    %v258 = vsub.f32 %v255, %v257
    %v259 = vadd.f32 %v255, %v257
    %v260 = vmul.f32 %v242, 0.5
    %v261 = vsub.f32 %v256, %v260
    %v262 = vadd.f32 %v256, %v260
    %v263 = vmin.f32 %v259, %v231
    %v264 = vmax.f32 %v258, %v230
    %v265 = vsub.f32 %v263, %v264
    %v266 = vmax.f32 %v265, 0.0
    %v267 = vmin.f32 %v262, %v234
    %v268 = vmax.f32 %v261, %v233
    %v269 = vsub.f32 %v267, %v268
    %v270 = vmax.f32 %v269, 0.0
    %v271 = vmul.f32 %v266, %v270
    %v272 = vmul.f32 %v240, %v242
    %v273 = vadd.f32 %v272, %v235
    %v274 = vsub.f32 %v273, %v271
    %vm275 = vcmp.ne.f32.partialorder %v274, 0.0
    %v276 = vsel %vm275, %v274, 1.0
    %v277 = vrcp.pop %v276
    %v278 = vmul.f32 %v276, %v277
    %v279 = vsub.f32 2.0, %v278
    %v280 = vmul.f32 %v277, %v279
    %v281 = vmul.f32 %v271, %v280
    %v282 = vmul.f32 %v245, 0.14285715
    %v283 = vmul.f32 %v248, 0.14285715
    %v284 = vmul.f32 %v251, 0.5
    %v285 = vsub.f32 %v282, %v284
    %v286 = vadd.f32 %v282, %v284
    %v287 = vmul.f32 %v254, 0.5
    %v288 = vsub.f32 %v283, %v287
    %v289 = vadd.f32 %v283, %v287
    %v290 = vmin.f32 %v286, %v231
    %v291 = vmax.f32 %v285, %v230
    %v292 = vsub.f32 %v290, %v291
    %v293 = vmax.f32 %v292, 0.0
    %v294 = vmin.f32 %v289, %v234
    %v295 = vmax.f32 %v288, %v233
    %v296 = vsub.f32 %v294, %v295
    %v297 = vmax.f32 %v296, 0.0
    %v298 = vmul.f32 %v293, %v297
    %v299 = vmul.f32 %v251, %v254
    %v300 = vadd.f32 %v299, %v235
    %v301 = vsub.f32 %v300, %v298
    %vm302 = vcmp.ne.f32.partialorder %v301, 0.0
    %v303 = vsel %vm302, %v301, 1.0
    %v304 = vrcp.pop %v303
    %v305 = vmul.f32 %v303, %v304
    %v306 = vsub.f32 2.0, %v305
    %v307 = vmul.f32 %v304, %v306
    %v308 = vmul.f32 %v298, %v307
    %vm309 = vcmp.gt.f32.partialorder %v308, %v281
    %v310 = vmax.f32 %v281, %v308
    %v311 = vsel %vm309, %v245, %v236
    %v312 = vsel %vm309, %v248, %v238
    %v313 = vsel %vm309, %v251, %v240
    %v314 = vsel %vm309, %v254, %v242
    %v315 = vsel %vm309, %v50, %v47
    %v316 = vsub.f32 %v311, %v217
    %v317 = vmul.f32 %v316, %v316
    %v318 = vsub.f32 %v312, %v220
    %v319 = vmul.f32 %v318, %v318
    %v320 = vadd.f32 %v317, %v319
    %v321 = vmax.f32 %v313, 0.0
    %v322 = vrsqrt.pop %v321
    %v323 = vmul.f32 %v321, %v322
    %vm324 = vcmp.eq.f32.partialorder %v321, inf
    %v325 = vsel %vm324, %v321, %v323
    %vm326 = vcmp.eq.f32.partialorder %v321, 0.0
    %v327 = vand.u32 %v321, 2147483648
    %v328 = vsel %vm326, %v327, %v325
    %v329 = vmax.f32 %v223, 0.0
    %v330 = vrsqrt.pop %v329
    %v331 = vmul.f32 %v329, %v330
    %vm332 = vcmp.eq.f32.partialorder %v329, inf
    %v333 = vsel %vm332, %v329, %v331
    %vm334 = vcmp.eq.f32.partialorder %v329, 0.0
    %v335 = vand.u32 %v329, 2147483648
    %v336 = vsel %vm334, %v335, %v333
    %v337 = vsub.f32 %v328, %v336
    %v338 = vmul.f32 %v337, %v337
    %v339 = vadd.f32 %v320, %v338
    %v340 = vmax.f32 %v314, 0.0
    %v341 = vrsqrt.pop %v340
    %v342 = vmul.f32 %v340, %v341
    %vm343 = vcmp.eq.f32.partialorder %v340, inf
    %v344 = vsel %vm343, %v340, %v342
    %vm345 = vcmp.eq.f32.partialorder %v340, 0.0
    %v346 = vand.u32 %v340, 2147483648
    %v347 = vsel %vm345, %v346, %v344
    %v348 = vmax.f32 %v226, 0.0
    %v349 = vrsqrt.pop %v348
    %v350 = vmul.f32 %v348, %v349
    %vm351 = vcmp.eq.f32.partialorder %v348, inf
    %v352 = vsel %vm351, %v348, %v350
    %vm353 = vcmp.eq.f32.partialorder %v348, 0.0
    %v354 = vand.u32 %v348, 2147483648
    %v355 = vsel %vm353, %v354, %v352
    %v356 = vsub.f32 %v347, %v355
    %v357 = vmul.f32 %v356, %v356
    %v358 = vadd.f32 %v339, %v357
    %v359 = vsub.f32 %v315, %v310
    %v360 = vmul.f32 %v359, %v359
    %v361 = vmul.f32 %v358, 5.0
    %v362 = vadd.f32 %v361, %v360
    %v363 = vadd.f32 %v362, %v216
    %v364 = vmul.f32 %v44, %v363
    %v365 = vmul.f32 %v45, %v57
    %v366 = vmul.f32 %v365, 0.5
    %v367 = vadd.f32 %v364, %v366
    %v368 = vadd.f32 %v367, 0.0
    %369 = vst [vmem:[#allocation7] sm:$0xff] %v368
    // Predicated region
    $region18: #{tpu_custom_call.1} parent=1 // pred_check
      _
    $region19: #{tpu_custom_call.1} parent=1 // pred_check_branch
      %371 = sbr.rel (0) target = $region21
    $region20: #{tpu_custom_call.1} parent=1 // pred_region
      %s373 = ssub.s32 128, 128
      %374 = vsyncadd [#allocation4], %s373
      %s376 = sshll.u32 [#allocation7], 4
      %s377 = int_to_ptr.vmem [resolvable:$true] %s376
      %379 = dma.vmem_to_hbm [thread:$0]  %s377, 128, %s2, [#allocation4]
    $region21: #{tpu_custom_call.1} parent=1 // pred_fallthru
      _
    // Predicated region
    $region22: #{tpu_custom_call.1} parent=1 // pred_check
      _
    $region23: #{tpu_custom_call.1} parent=1 // pred_check_branch
      %381 = sbr.rel (0) target = $region25
    $region24: #{tpu_custom_call.1} parent=1 // pred_region
      %382 = dma.done [#allocation4], 128
    $region25: #{tpu_custom_call.1} parent=1 // pred_fallthru
      _
    %383 = vsyncpa [#allocation3], 1
    %384 = vsyncpa [#allocation6], 1
    %385 = vsyncpa [#allocation4], 1

</llo_original>
